<compile_context>
chip_gen: v7x
topology: tpu7x:2x2x1
jax: 0.10.0
libtpu: 0.0.40
codegen_flags: <defaults>
</compile_context>

<pallas_src>
import jax
import jax.numpy as jnp
import numpy as np
from jax.experimental import pallas as pl
from jax.experimental.pallas import tpu as pltpu


def _lr_kernel(offs_ref, bias_ref, idx_ref, w_ref, out_ref):
    # offs_ref: [F]      int32   (SMEM, per-field offsets)
    # bias_ref: [1, 1]   float32 (SMEM scalar)
    # idx_ref : [TB, F]  int32   (VMEM, raw per-field indices for this tile)
    # w_ref   : [1, Vp]  float32 (VMEM, lane-major weight row, resident)
    # out_ref : [TB, 1]  float32
    idx = idx_ref[...]                    # [TB, F]
    w_row = w_ref[...]                    # [1, Vp]
    TB, F = idx.shape
    Vp = w_row.shape[1]

    # Hoisted out of the field loop (JAX does not CSE broadcast_in_dim).
    iota_v = jax.lax.broadcasted_iota(jnp.int32, (TB, Vp), 1)

    # counts[b, v] = #fields f with (idx[b, f] + offset[f]) == v
    counts = jnp.zeros((TB, Vp), jnp.float32)
    for f in range(F):                    # F is a tiny static constant -> unrolled
        g = idx[:, f:f + 1] + offs_ref[f]           # [TB, 1] global index
        counts = counts + (g == iota_v).astype(jnp.float32)

    # Embedding gather + sum over fields == weighted lane reduce
    # (VPU multiply + XLU reduce); avoids an N=1 matmul that would waste
    # >99% of the MXU output width.
    out = jnp.sum(counts * w_row, axis=-1, keepdims=True)   # [TB, 1]
    out_ref[...] = out + bias_ref[0, 0]


def logistic_regression_forward(x_idx, offsets, weight, bias, *, tb=128):
    """
    x_idx  : [B, F] int raw per-field indices
    offsets: [F]    int cumulative field offsets
    weight : [V, 1] float32 embedding table (V = sum(field_dims))
    bias   : [1]    float32
    returns: [B, 1] float32
    """
    B, F = x_idx.shape
    V = weight.shape[0]
    V_pad = ((V + 127) // 128) * 128
    B_pad = ((B + tb - 1) // tb) * tb

    idx = x_idx.astype(jnp.int32)
    if B_pad != B:
        # Padded tail rows compute harmless garbage and are sliced off below.
        idx = jnp.pad(idx, ((0, B_pad - B), (0, 0)))

    # Lane-major dense weight slab [1, V_pad]; padded lanes are zero and can
    # never be hit (all global indices are < V).
    w_row = jnp.zeros((1, V_pad), jnp.float32).at[0, :V].set(
        weight.reshape(-1).astype(jnp.float32))
    bias2d = bias.reshape(1, 1).astype(jnp.float32)
    offs = offsets.astype(jnp.int32)

    out = pl.pallas_call(
        _lr_kernel,
        out_shape=jax.ShapeDtypeStruct((B_pad, 1), jnp.float32),
        grid=(B_pad // tb,),
        in_specs=[
            pl.BlockSpec(memory_space=pltpu.MemorySpace.SMEM),     # offsets
            pl.BlockSpec(memory_space=pltpu.MemorySpace.SMEM),     # bias
            pl.BlockSpec((tb, F), lambda i: (i, 0)),               # idx tile
            pl.BlockSpec((1, V_pad), lambda i: (0, 0)),            # weight (resident)
        ],
        out_specs=pl.BlockSpec((tb, 1), lambda i: (i, 0)),
        compiler_params=pltpu.CompilerParams(
            dimension_semantics=("parallel",)),
    )(offs, bias2d, idx, w_row)
    return out[:B]


if __name__ == "__main__":
    # Small deterministic setup consistent with the module:
    # field_dims -> vocab sizes per categorical field.
    field_dims = [3, 4, 5, 6]
    num_fields = len(field_dims)
    V = int(np.sum(field_dims))
    B = 2

    offsets = jnp.asarray(
        np.concatenate(([0], np.cumsum(field_dims)[:-1])), dtype=jnp.int32
    )

    key = jax.random.PRNGKey(0)
    k_w, k_x = jax.random.split(key)

    # Deterministic parameter init (synthetic, not a checkpoint).
    weight = jax.random.normal(k_w, (V, 1), dtype=jnp.float32) * 0.01
    bias = jnp.zeros((1,), dtype=jnp.float32)

    # Random per-field indices, each in [0, field_dims[f]).
    x_np = np.stack(
        [
            np.asarray(
                jax.random.randint(
                    jax.random.fold_in(k_x, f), (B,), 0, field_dims[f]
                )
            )
            for f in range(num_fields)
        ],
        axis=1,
    ).astype(np.int32)
    x_idx = jnp.asarray(x_np)  # [B, num_fields]

    out = logistic_regression_forward(x_idx, offsets, weight, bias)
    out = jax.block_until_ready(out)

    # Pure-JAX reference check (embedding gather + field sum + bias).
    idx_global = x_idx + offsets[None, :]
    ref = jnp.sum(weight[idx_global, 0], axis=1, keepdims=True) + bias[None, :]
    assert out.shape == (B, 1)
    np.testing.assert_allclose(np.asarray(out), np.asarray(ref), rtol=1e-5, atol=1e-6)

    print("KERNEL_OK")
</pallas_src>

<mosaic_0001>
module attributes {stable_mosaic.version = 11 : i64} {
  func.func @_lr_kernel(%arg0: i32, %arg1: memref<4xi32, #tpu.memory_space<smem>>, %arg2: memref<1x1xf32, #tpu.memory_space<smem>>, %arg3: memref<128x4xi32, #tpu.memory_space<vmem>>, %arg4: memref<1x128xf32, #tpu.memory_space<vmem>>, %arg5: memref<128x1xf32, #tpu.memory_space<vmem>>) attributes {dimension_semantics = [#tpu.dimension_semantics<parallel>], iteration_bounds = array<i64: 1>, scalar_prefetch = 0 : i64, scratch_operands = 0 : i64, tpu.core_type = #tpu.core_type<tc>, window_params = [{transform_indices = @transform_0, window_bounds = array<i64: 4>}, {transform_indices = @transform_1, window_bounds = array<i64: 1, 1>}, {transform_indices = @transform_2, window_bounds = array<i64: 128, 4>}, {pipeline_mode = #tpu.pipeline_mode<synchronous>, transform_indices = @transform_3, window_bounds = array<i64: 1, 128>}, {transform_indices = @transform_4, window_bounds = array<i64: 128, 1>}]} {
    %c0 = arith.constant 0 : index
    %c0_0 = arith.constant 0 : index
    %0 = vector.load %arg3[%c0, %c0_0] : memref<128x4xi32, #tpu.memory_space<vmem>>, vector<128x4xi32>
    %c0_1 = arith.constant 0 : index
    %c0_2 = arith.constant 0 : index
    %1 = vector.load %arg4[%c0_1, %c0_2] : memref<1x128xf32, #tpu.memory_space<vmem>>, vector<1x128xf32>
    %2 = tpu.iota {dimensions = array<i32: 1>} : vector<128x128xi32>
    %cst = arith.constant 0.000000e+00 : f32
    %3 = vector.broadcast %cst : f32 to vector<128x128xf32>
    %4 = vector.extract_strided_slice %0 {offsets = [0, 0], sizes = [128, 1], strides = [1, 1]} : vector<128x4xi32> to vector<128x1xi32>
    %c0_3 = arith.constant 0 : index
    %5 = memref.load %arg1[%c0_3] : memref<4xi32, #tpu.memory_space<smem>>
    %6 = vector.broadcast %5 : i32 to vector<128x1xi32>
    %7 = arith.addi %4, %6 : vector<128x1xi32>
    %8 = vector.broadcast %7 : vector<128x1xi32> to vector<128x128xi32>
    %9 = arith.cmpi eq, %8, %2 : vector<128x128xi32>
    %10 = arith.extui %9 : vector<128x128xi1> to vector<128x128xi32>
    %11 = arith.sitofp %10 : vector<128x128xi32> to vector<128x128xf32>
    %12 = arith.addf %3, %11 : vector<128x128xf32>
    %13 = vector.extract_strided_slice %0 {offsets = [0, 1], sizes = [128, 1], strides = [1, 1]} : vector<128x4xi32> to vector<128x1xi32>
    %c1 = arith.constant 1 : index
    %14 = memref.load %arg1[%c1] : memref<4xi32, #tpu.memory_space<smem>>
    %15 = vector.broadcast %14 : i32 to vector<128x1xi32>
    %16 = arith.addi %13, %15 : vector<128x1xi32>
    %17 = vector.broadcast %16 : vector<128x1xi32> to vector<128x128xi32>
    %18 = arith.cmpi eq, %17, %2 : vector<128x128xi32>
    %19 = arith.extui %18 : vector<128x128xi1> to vector<128x128xi32>
    %20 = arith.sitofp %19 : vector<128x128xi32> to vector<128x128xf32>
    %21 = arith.addf %12, %20 : vector<128x128xf32>
    %22 = vector.extract_strided_slice %0 {offsets = [0, 2], sizes = [128, 1], strides = [1, 1]} : vector<128x4xi32> to vector<128x1xi32>
    %c2 = arith.constant 2 : index
    %23 = memref.load %arg1[%c2] : memref<4xi32, #tpu.memory_space<smem>>
    %24 = vector.broadcast %23 : i32 to vector<128x1xi32>
    %25 = arith.addi %22, %24 : vector<128x1xi32>
    %26 = vector.broadcast %25 : vector<128x1xi32> to vector<128x128xi32>
    %27 = arith.cmpi eq, %26, %2 : vector<128x128xi32>
    %28 = arith.extui %27 : vector<128x128xi1> to vector<128x128xi32>
    %29 = arith.sitofp %28 : vector<128x128xi32> to vector<128x128xf32>
    %30 = arith.addf %21, %29 : vector<128x128xf32>
    %31 = vector.extract_strided_slice %0 {offsets = [0, 3], sizes = [128, 1], strides = [1, 1]} : vector<128x4xi32> to vector<128x1xi32>
    %c3 = arith.constant 3 : index
    %32 = memref.load %arg1[%c3] : memref<4xi32, #tpu.memory_space<smem>>
    %33 = vector.broadcast %32 : i32 to vector<128x1xi32>
    %34 = arith.addi %31, %33 : vector<128x1xi32>
    %35 = vector.broadcast %34 : vector<128x1xi32> to vector<128x128xi32>
    %36 = arith.cmpi eq, %35, %2 : vector<128x128xi32>
    %37 = arith.extui %36 : vector<128x128xi1> to vector<128x128xi32>
    %38 = arith.sitofp %37 : vector<128x128xi32> to vector<128x128xf32>
    %39 = arith.addf %30, %38 : vector<128x128xf32>
    %40 = vector.broadcast %1 : vector<1x128xf32> to vector<128x128xf32>
    %41 = arith.mulf %39, %40 : vector<128x128xf32>
    %cst_4 = arith.constant dense<0.000000e+00> : vector<128xf32>
    %42 = vector.multi_reduction <add>, %41, %cst_4 [1] : vector<128x128xf32> to vector<128xf32>
    %43 = vector.shape_cast %42 : vector<128xf32> to vector<128x1xf32>
    %c0_5 = arith.constant 0 : index
    %c0_6 = arith.constant 0 : index
    %44 = memref.load %arg2[%c0_5, %c0_6] : memref<1x1xf32, #tpu.memory_space<smem>>
    %45 = vector.broadcast %44 : f32 to vector<128x1xf32>
    %46 = arith.addf %43, %45 : vector<128x1xf32>
    %c0_7 = arith.constant 0 : index
    %c0_8 = arith.constant 0 : index
    %47 = vector.load %arg5[%c0_7, %c0_8] : memref<128x1xf32, #tpu.memory_space<vmem>>, vector<128x1xf32>
    tpu.vector_store %arg5[%c0_7, %c0_8], %46 {strides = array<i32>} : memref<128x1xf32, #tpu.memory_space<vmem>>, vector<128x1xf32>,
    return
  }
  func.func @transform_0(%arg0: i32) -> i32 {
    %c0_i32 = arith.constant 0 : i32
    %c0_i32_0 = arith.constant 0 : i32
    return %c0_i32 : i32
  }
  func.func @transform_1(%arg0: i32) -> (i32, i32) {
    %c0_i32 = arith.constant 0 : i32
    %c0_i32_0 = arith.constant 0 : i32
    %c0_i32_1 = arith.constant 0 : i32
    return %c0_i32, %c0_i32_0 : i32, i32
  }
  func.func @transform_2(%arg0: i32) -> (i32, i32) {
    %c0_i32 = arith.constant 0 : i32
    %c0_i32_0 = arith.constant 0 : i32
    return %arg0, %c0_i32 : i32, i32
  }
  func.func @transform_3(%arg0: i32) -> (i32, i32) {
    %c0_i32 = arith.constant 0 : i32
    %c0_i32_0 = arith.constant 0 : i32
    %c0_i32_1 = arith.constant 0 : i32
    return %c0_i32, %c0_i32_0 : i32, i32
  }
  func.func @transform_4(%arg0: i32) -> (i32, i32) {
    %c0_i32 = arith.constant 0 : i32
    %c0_i32_0 = arith.constant 0 : i32
    return %arg0, %c0_i32 : i32, i32
  }
}

</mosaic_0001>

<llo_original>
// kernel: tpu_custom_call.1
$region0: #{tpu_custom_call.1}
  #allocation0 [shape = 'u32[]', space=smem, size = 0x4, offset = 0x4, fixed_abs, tag = 'smem constant byte address 0x4 - core index']
  #allocation1 [shape = 'u32[144,128]{1,0:T(1,128)}', space=vmem, size = 0x12000, scoped, tag = 'internal scratch']
  #allocation2 [shape = 'f32[1,1]{1,0:T(1,128)S(6)}', space=smem, size = 0x200, scoped, tag = 'scoped memory for tpu_custom_call.1']
  %s0 = inlined_call_operand.vmem [shape: s32[4], index: 0, kind: input, shape index: {}]
  %s1 = inlined_call_operand.<no memory space> [shape: f32[1,1], index: 1, kind: input, shape index: {}]
  %s2 = inlined_call_operand.vmem [shape: s32[128,4], index: 2, kind: input, shape index: {}]
  %s3 = inlined_call_operand.vmem [shape: f32[1,128], index: 3, kind: input, shape index: {}]
  %s4 = inlined_call_operand.vmem [shape: f32[128,1], index: 4, kind: output, shape index: {}]
  %s5 = sld [smem:[#allocation0]]
  $region30: #{tpu_custom_call.1} parent=0
    _
  %s7 = ssub.s32 1, %s5
  %s8 = scalar_select 0, %s7, %s5
  %9 = sst [smem:[#allocation2]] %s1
  $region1: #{tpu_custom_call.1} parent=0
    #allocation3 [shape = 'u8[512]{0}', space=smem, size = 0x200, scoped, tag = 'input window, operand 0, single buffered']
    #allocation4 [shape = 's32[1]{0}', space=sflag, size = 0x4, scoped, tag = 'scoped memory for tpu_custom_call.1']
    %10 = vsyncpa [#allocation4], 0
    // Predicated region
    $region2: #{tpu_custom_call.1} parent=1 // pred_check
      _
    $region3: #{tpu_custom_call.1} parent=1 // pred_check_branch
      %12 = sbr.rel (0) target = $region5
    $region4: #{tpu_custom_call.1} parent=1 // pred_region
      %s14 = ssub.s32 16, 16
      %15 = vsyncadd [#allocation4], %s14
      %s17 = sshll.u32 %s0, 4
      %s18 = int_to_ptr.vmem [resolvable:$true] %s17
      %20 = dma.vmem_to_smem %s18, 16, [#allocation3], [#allocation4]
    $region5: #{tpu_custom_call.1} parent=1 // pred_fallthru
      _
    // Predicated region
    $region6: #{tpu_custom_call.1} parent=1 // pred_check
      _
    $region7: #{tpu_custom_call.1} parent=1 // pred_check_branch
      %22 = sbr.rel (0) target = $region9
    $region8: #{tpu_custom_call.1} parent=1 // pred_region
      _
    $region9: #{tpu_custom_call.1} parent=1 // pred_fallthru
      _
    // Predicated region
    $region10: #{tpu_custom_call.1} parent=1 // pred_check
      _
    $region11: #{tpu_custom_call.1} parent=1 // pred_check_branch
      %24 = sbr.rel (0) target = $region13
    $region12: #{tpu_custom_call.1} parent=1 // pred_region
      _
    $region13: #{tpu_custom_call.1} parent=1 // pred_fallthru
      _
    // Predicated region
    $region14: #{tpu_custom_call.1} parent=1 // pred_check
      _
    $region15: #{tpu_custom_call.1} parent=1 // pred_check_branch
      %26 = sbr.rel (0) target = $region17
    $region16: #{tpu_custom_call.1} parent=1 // pred_region
      _
    $region17: #{tpu_custom_call.1} parent=1 // pred_fallthru
      _
    // Predicated region
    $region18: #{tpu_custom_call.1} parent=1 // pred_check
      _
    $region19: #{tpu_custom_call.1} parent=1 // pred_check_branch
      %28 = sbr.rel (0) target = $region21
    $region20: #{tpu_custom_call.1} parent=1 // pred_region
      %29 = dma.done [#allocation4], 16
    $region21: #{tpu_custom_call.1} parent=1 // pred_fallthru
      _
    %30 = sfence
    %v31 = vld [vmem:[%s2] sm:$0xff]
    %v32 = vld [vmem:[%s2 + $0x8] sm:$0xff]
    %v33 = vld [vmem:[%s2 + $0x10] sm:$0xff]
    %v34 = vld [vmem:[%s2 + $0x18] sm:$0xff]
    %v35 = vld [vmem:[%s2 + $0x20] sm:$0xff]
    %v36 = vld [vmem:[%s2 + $0x28] sm:$0xff]
    %v37 = vld [vmem:[%s2 + $0x30] sm:$0xff]
    %v38 = vld [vmem:[%s2 + $0x38] sm:$0xff]
    %v39 = vld [vmem:[%s2 + $0x40] sm:$0xff]
    %v40 = vld [vmem:[%s2 + $0x48] sm:$0xff]
    %v41 = vld [vmem:[%s2 + $0x50] sm:$0xff]
    %v42 = vld [vmem:[%s2 + $0x58] sm:$0xff]
    %v43 = vld [vmem:[%s2 + $0x60] sm:$0xff]
    %v44 = vld [vmem:[%s2 + $0x68] sm:$0xff]
    %v45 = vld [vmem:[%s2 + $0x70] sm:$0xff]
    %v46 = vld [vmem:[%s2 + $0x78] sm:$0xff]
    %v47 = vld [vmem:[%s3] sm:$0x1]
    %v48 = vlaneseq
    %v49 = vand.u32 %v48, 127
    %s50 = sld [smem:[#allocation3]]
    %v51 = vstv %s50
    %v52 = vadd.s32 %v31, %v51
    %v53 = vadd.s32 %v32, %v51
    %v54 = vadd.s32 %v33, %v51
    %v55 = vadd.s32 %v34, %v51
    %v56 = vadd.s32 %v35, %v51
    %v57 = vadd.s32 %v36, %v51
    %v58 = vadd.s32 %v37, %v51
    %v59 = vadd.s32 %v38, %v51
    %v60 = vadd.s32 %v39, %v51
    %v61 = vadd.s32 %v40, %v51
    %v62 = vadd.s32 %v41, %v51
    %v63 = vadd.s32 %v42, %v51
    %v64 = vadd.s32 %v43, %v51
    %v65 = vadd.s32 %v44, %v51
    %v66 = vadd.s32 %v45, %v51
    %v67 = vadd.s32 %v46, %v51
    %68 = vset.pattern.permute.xlu0 0
    %69 = vperm.xlu0 %68, %v52
    %v70 = vpop.permute.xlu0 %69
    %71 = vset.pattern.permute.xlu0 0
    %72 = vperm.xlu0 %71, %v53
    %v73 = vpop.permute.xlu0 %72
    %74 = vset.pattern.permute.xlu0 0
    %75 = vperm.xlu0 %74, %v54
    %v76 = vpop.permute.xlu0 %75
    %77 = vset.pattern.permute.xlu0 0
    %78 = vperm.xlu0 %77, %v55
    %v79 = vpop.permute.xlu0 %78
    %80 = vset.pattern.permute.xlu0 0
    %81 = vperm.xlu0 %80, %v56
    %v82 = vpop.permute.xlu0 %81
    %83 = vset.pattern.permute.xlu0 0
    %84 = vperm.xlu0 %83, %v57
    %v85 = vpop.permute.xlu0 %84
    %86 = vset.pattern.permute.xlu0 0
    %87 = vperm.xlu0 %86, %v58
    %v88 = vpop.permute.xlu0 %87
    %89 = vset.pattern.permute.xlu0 0
    %90 = vperm.xlu0 %89, %v59
    %v91 = vpop.permute.xlu0 %90
    %92 = vset.pattern.permute.xlu0 0
    %93 = vperm.xlu0 %92, %v60
    %v94 = vpop.permute.xlu0 %93
    %95 = vset.pattern.permute.xlu0 0
    %96 = vperm.xlu0 %95, %v61
    %v97 = vpop.permute.xlu0 %96
    %98 = vset.pattern.permute.xlu0 0
    %99 = vperm.xlu0 %98, %v62
    %v100 = vpop.permute.xlu0 %99
    %101 = vset.pattern.permute.xlu0 0
    %102 = vperm.xlu0 %101, %v63
    %v103 = vpop.permute.xlu0 %102
    %104 = vset.pattern.permute.xlu0 0
    %105 = vperm.xlu0 %104, %v64
    %v106 = vpop.permute.xlu0 %105
    %107 = vset.pattern.permute.xlu0 0
    %108 = vperm.xlu0 %107, %v65
    %v109 = vpop.permute.xlu0 %108
    %110 = vset.pattern.permute.xlu0 0
    %111 = vperm.xlu0 %110, %v66
    %v112 = vpop.permute.xlu0 %111
    %113 = vset.pattern.permute.xlu0 0
    %114 = vperm.xlu0 %113, %v67
    %v115 = vpop.permute.xlu0 %114
    %vm116 = vcmp.eq.s32.totalorder %v70, %v49
    %vm117 = vcmp.eq.s32.totalorder %v73, %v49
    %vm118 = vcmp.eq.s32.totalorder %v76, %v49
    %vm119 = vcmp.eq.s32.totalorder %v79, %v49
    %vm120 = vcmp.eq.s32.totalorder %v82, %v49
    %vm121 = vcmp.eq.s32.totalorder %v85, %v49
    %vm122 = vcmp.eq.s32.totalorder %v88, %v49
    %vm123 = vcmp.eq.s32.totalorder %v91, %v49
    %vm124 = vcmp.eq.s32.totalorder %v94, %v49
    %vm125 = vcmp.eq.s32.totalorder %v97, %v49
    %vm126 = vcmp.eq.s32.totalorder %v100, %v49
    %vm127 = vcmp.eq.s32.totalorder %v103, %v49
    %vm128 = vcmp.eq.s32.totalorder %v106, %v49
    %vm129 = vcmp.eq.s32.totalorder %v109, %v49
    %vm130 = vcmp.eq.s32.totalorder %v112, %v49
    %vm131 = vcmp.eq.s32.totalorder %v115, %v49
    %v132 = vsel %vm116, 1, 0
    %v133 = vsel %vm117, 1, 0
    %v134 = vsel %vm118, 1, 0
    %v135 = vsel %vm119, 1, 0
    %v136 = vsel %vm120, 1, 0
    %v137 = vsel %vm121, 1, 0
    %v138 = vsel %vm122, 1, 0
    %v139 = vsel %vm123, 1, 0
    %v140 = vsel %vm124, 1, 0
    %v141 = vsel %vm125, 1, 0
    %v142 = vsel %vm126, 1, 0
    %v143 = vsel %vm127, 1, 0
    %v144 = vsel %vm128, 1, 0
    %v145 = vsel %vm129, 1, 0
    %v146 = vsel %vm130, 1, 0
    %v147 = vsel %vm131, 1, 0
    %v148 = vcvt.s32.f32 %v132
    %v149 = vcvt.s32.f32 %v133
    %v150 = vcvt.s32.f32 %v134
    %v151 = vcvt.s32.f32 %v135
    %v152 = vcvt.s32.f32 %v136
    %v153 = vcvt.s32.f32 %v137
    %v154 = vcvt.s32.f32 %v138
    %v155 = vcvt.s32.f32 %v139
    %v156 = vcvt.s32.f32 %v140
    %v157 = vcvt.s32.f32 %v141
    %v158 = vcvt.s32.f32 %v142
    %v159 = vcvt.s32.f32 %v143
    %v160 = vcvt.s32.f32 %v144
    %v161 = vcvt.s32.f32 %v145
    %v162 = vcvt.s32.f32 %v146
    %v163 = vcvt.s32.f32 %v147
    %v164 = vadd.f32 %v148, 0.0
    %v165 = vadd.f32 %v149, 0.0
    %v166 = vadd.f32 %v150, 0.0
    %v167 = vadd.f32 %v151, 0.0
    %v168 = vadd.f32 %v152, 0.0
    %v169 = vadd.f32 %v153, 0.0
    %v170 = vadd.f32 %v154, 0.0
    %v171 = vadd.f32 %v155, 0.0
    %v172 = vadd.f32 %v156, 0.0
    %v173 = vadd.f32 %v157, 0.0
    %v174 = vadd.f32 %v158, 0.0
    %v175 = vadd.f32 %v159, 0.0
    %v176 = vadd.f32 %v160, 0.0
    %v177 = vadd.f32 %v161, 0.0
    %v178 = vadd.f32 %v162, 0.0
    %v179 = vadd.f32 %v163, 0.0
    %s180 = sld [smem:[#allocation3 + $0x1]]
    %v181 = vstv %s180
    %v182 = vadd.s32 %v31, %v181
    %v183 = vadd.s32 %v32, %v181
    %v184 = vadd.s32 %v33, %v181
    %v185 = vadd.s32 %v34, %v181
    %v186 = vadd.s32 %v35, %v181
    %v187 = vadd.s32 %v36, %v181
    %v188 = vadd.s32 %v37, %v181
    %v189 = vadd.s32 %v38, %v181
    %v190 = vadd.s32 %v39, %v181
    %v191 = vadd.s32 %v40, %v181
    %v192 = vadd.s32 %v41, %v181
    %v193 = vadd.s32 %v42, %v181
    %v194 = vadd.s32 %v43, %v181
    %v195 = vadd.s32 %v44, %v181
    %v196 = vadd.s32 %v45, %v181
    %v197 = vadd.s32 %v46, %v181
    %198 = vset.pattern.permute.xlu0 1
    %199 = vperm.xlu0 %198, %v182
    %v200 = vpop.permute.xlu0 %199
    %201 = vset.pattern.permute.xlu0 1
    %202 = vperm.xlu0 %201, %v183
    %v203 = vpop.permute.xlu0 %202
    %204 = vset.pattern.permute.xlu0 1
    %205 = vperm.xlu0 %204, %v184
    %v206 = vpop.permute.xlu0 %205
    %207 = vset.pattern.permute.xlu0 1
    %208 = vperm.xlu0 %207, %v185
    %v209 = vpop.permute.xlu0 %208
    %210 = vset.pattern.permute.xlu0 1
    %211 = vperm.xlu0 %210, %v186
    %v212 = vpop.permute.xlu0 %211
    %213 = vset.pattern.permute.xlu0 1
    %214 = vperm.xlu0 %213, %v187
    %v215 = vpop.permute.xlu0 %214
    %216 = vset.pattern.permute.xlu0 1
    %217 = vperm.xlu0 %216, %v188
    %v218 = vpop.permute.xlu0 %217
    %219 = vset.pattern.permute.xlu0 1
    %220 = vperm.xlu0 %219, %v189
    %v221 = vpop.permute.xlu0 %220
    %222 = vset.pattern.permute.xlu0 1
    %223 = vperm.xlu0 %222, %v190
    %v224 = vpop.permute.xlu0 %223
    %225 = vset.pattern.permute.xlu0 1
    %226 = vperm.xlu0 %225, %v191
    %v227 = vpop.permute.xlu0 %226
    %228 = vset.pattern.permute.xlu0 1
    %229 = vperm.xlu0 %228, %v192
    %v230 = vpop.permute.xlu0 %229
    %231 = vset.pattern.permute.xlu0 1
    %232 = vperm.xlu0 %231, %v193
    %v233 = vpop.permute.xlu0 %232
    %234 = vset.pattern.permute.xlu0 1
    %235 = vperm.xlu0 %234, %v194
    %v236 = vpop.permute.xlu0 %235
    %237 = vset.pattern.permute.xlu0 1
    %238 = vperm.xlu0 %237, %v195
    %v239 = vpop.permute.xlu0 %238
    %240 = vset.pattern.permute.xlu0 1
    %241 = vperm.xlu0 %240, %v196
    %v242 = vpop.permute.xlu0 %241
    %243 = vset.pattern.permute.xlu0 1
    %244 = vperm.xlu0 %243, %v197
    %v245 = vpop.permute.xlu0 %244
    %vm246 = vcmp.eq.s32.totalorder %v200, %v49
    %vm247 = vcmp.eq.s32.totalorder %v203, %v49
    %vm248 = vcmp.eq.s32.totalorder %v206, %v49
    %vm249 = vcmp.eq.s32.totalorder %v209, %v49
    %vm250 = vcmp.eq.s32.totalorder %v212, %v49
    %vm251 = vcmp.eq.s32.totalorder %v215, %v49
    %vm252 = vcmp.eq.s32.totalorder %v218, %v49
    %vm253 = vcmp.eq.s32.totalorder %v221, %v49
    %vm254 = vcmp.eq.s32.totalorder %v224, %v49
    %vm255 = vcmp.eq.s32.totalorder %v227, %v49
    %vm256 = vcmp.eq.s32.totalorder %v230, %v49
    %vm257 = vcmp.eq.s32.totalorder %v233, %v49
    %vm258 = vcmp.eq.s32.totalorder %v236, %v49
    %vm259 = vcmp.eq.s32.totalorder %v239, %v49
    %vm260 = vcmp.eq.s32.totalorder %v242, %v49
    %vm261 = vcmp.eq.s32.totalorder %v245, %v49
    %v262 = vsel %vm246, 1, 0
    %v263 = vsel %vm247, 1, 0
    %v264 = vsel %vm248, 1, 0
    %v265 = vsel %vm249, 1, 0
    %v266 = vsel %vm250, 1, 0
    %v267 = vsel %vm251, 1, 0
    %v268 = vsel %vm252, 1, 0
    %v269 = vsel %vm253, 1, 0
    %v270 = vsel %vm254, 1, 0
    %v271 = vsel %vm255, 1, 0
    %v272 = vsel %vm256, 1, 0
    %v273 = vsel %vm257, 1, 0
    %v274 = vsel %vm258, 1, 0
    %v275 = vsel %vm259, 1, 0
    %v276 = vsel %vm260, 1, 0
    %v277 = vsel %vm261, 1, 0
    %v278 = vcvt.s32.f32 %v262
    %v279 = vcvt.s32.f32 %v263
    %v280 = vcvt.s32.f32 %v264
    %v281 = vcvt.s32.f32 %v265
    %v282 = vcvt.s32.f32 %v266
    %v283 = vcvt.s32.f32 %v267
    %v284 = vcvt.s32.f32 %v268
    %v285 = vcvt.s32.f32 %v269
    %v286 = vcvt.s32.f32 %v270
    %v287 = vcvt.s32.f32 %v271
    %v288 = vcvt.s32.f32 %v272
    %v289 = vcvt.s32.f32 %v273
    %v290 = vcvt.s32.f32 %v274
    %v291 = vcvt.s32.f32 %v275
    %v292 = vcvt.s32.f32 %v276
    %v293 = vcvt.s32.f32 %v277
    %v294 = vadd.f32 %v164, %v278
    %v295 = vadd.f32 %v165, %v279
    %v296 = vadd.f32 %v166, %v280
    %v297 = vadd.f32 %v167, %v281
    %v298 = vadd.f32 %v168, %v282
    %v299 = vadd.f32 %v169, %v283
    %v300 = vadd.f32 %v170, %v284
    %v301 = vadd.f32 %v171, %v285
    %v302 = vadd.f32 %v172, %v286
    %v303 = vadd.f32 %v173, %v287
    %v304 = vadd.f32 %v174, %v288
    %v305 = vadd.f32 %v175, %v289
    %v306 = vadd.f32 %v176, %v290
    %v307 = vadd.f32 %v177, %v291
    %v308 = vadd.f32 %v178, %v292
    %v309 = vadd.f32 %v179, %v293
    %s310 = sld [smem:[#allocation3 + $0x2]]
    %v311 = vstv %s310
    %v312 = vadd.s32 %v31, %v311
    %v313 = vadd.s32 %v32, %v311
    %v314 = vadd.s32 %v33, %v311
    %v315 = vadd.s32 %v34, %v311
    %v316 = vadd.s32 %v35, %v311
    %v317 = vadd.s32 %v36, %v311
    %v318 = vadd.s32 %v37, %v311
    %v319 = vadd.s32 %v38, %v311
    %v320 = vadd.s32 %v39, %v311
    %v321 = vadd.s32 %v40, %v311
    %v322 = vadd.s32 %v41, %v311
    %v323 = vadd.s32 %v42, %v311
    %v324 = vadd.s32 %v43, %v311
    %v325 = vadd.s32 %v44, %v311
    %v326 = vadd.s32 %v45, %v311
    %v327 = vadd.s32 %v46, %v311
    %328 = vset.pattern.permute.xlu0 2
    %329 = vperm.xlu0 %328, %v312
    %v330 = vpop.permute.xlu0 %329
    %331 = vset.pattern.permute.xlu0 2
    %332 = vperm.xlu0 %331, %v313
    %v333 = vpop.permute.xlu0 %332
    %334 = vset.pattern.permute.xlu0 2
    %335 = vperm.xlu0 %334, %v314
    %v336 = vpop.permute.xlu0 %335
    %337 = vset.pattern.permute.xlu0 2
    %338 = vperm.xlu0 %337, %v315
    %v339 = vpop.permute.xlu0 %338
    %340 = vset.pattern.permute.xlu0 2
    %341 = vperm.xlu0 %340, %v316
    %v342 = vpop.permute.xlu0 %341
    %343 = vset.pattern.permute.xlu0 2
    %344 = vperm.xlu0 %343, %v317
    %v345 = vpop.permute.xlu0 %344
    %346 = vset.pattern.permute.xlu0 2
    %347 = vperm.xlu0 %346, %v318
    %v348 = vpop.permute.xlu0 %347
    %349 = vset.pattern.permute.xlu0 2
    %350 = vperm.xlu0 %349, %v319
    %v351 = vpop.permute.xlu0 %350
    %352 = vset.pattern.permute.xlu0 2
    %353 = vperm.xlu0 %352, %v320
    %v354 = vpop.permute.xlu0 %353
    %355 = vset.pattern.permute.xlu0 2
    %356 = vperm.xlu0 %355, %v321
    %v357 = vpop.permute.xlu0 %356
    %358 = vset.pattern.permute.xlu0 2
    %359 = vperm.xlu0 %358, %v322
    %v360 = vpop.permute.xlu0 %359
    %361 = vset.pattern.permute.xlu0 2
    %362 = vperm.xlu0 %361, %v323
    %v363 = vpop.permute.xlu0 %362
    %364 = vset.pattern.permute.xlu0 2
    %365 = vperm.xlu0 %364, %v324
    %v366 = vpop.permute.xlu0 %365
    %367 = vset.pattern.permute.xlu0 2
    %368 = vperm.xlu0 %367, %v325
    %v369 = vpop.permute.xlu0 %368
    %370 = vset.pattern.permute.xlu0 2
    %371 = vperm.xlu0 %370, %v326
    %v372 = vpop.permute.xlu0 %371
    %373 = vset.pattern.permute.xlu0 2
    %374 = vperm.xlu0 %373, %v327
    %v375 = vpop.permute.xlu0 %374
    %vm376 = vcmp.eq.s32.totalorder %v330, %v49
    %vm377 = vcmp.eq.s32.totalorder %v333, %v49
    %vm378 = vcmp.eq.s32.totalorder %v336, %v49
    %vm379 = vcmp.eq.s32.totalorder %v339, %v49
    %vm380 = vcmp.eq.s32.totalorder %v342, %v49
    %vm381 = vcmp.eq.s32.totalorder %v345, %v49
    %vm382 = vcmp.eq.s32.totalorder %v348, %v49
    %vm383 = vcmp.eq.s32.totalorder %v351, %v49
    %vm384 = vcmp.eq.s32.totalorder %v354, %v49
    %vm385 = vcmp.eq.s32.totalorder %v357, %v49
    %vm386 = vcmp.eq.s32.totalorder %v360, %v49
    %vm387 = vcmp.eq.s32.totalorder %v363, %v49
    %vm388 = vcmp.eq.s32.totalorder %v366, %v49
    %vm389 = vcmp.eq.s32.totalorder %v369, %v49
    %vm390 = vcmp.eq.s32.totalorder %v372, %v49
    %vm391 = vcmp.eq.s32.totalorder %v375, %v49
    %v392 = vsel %vm376, 1, 0
    %v393 = vsel %vm377, 1, 0
    %v394 = vsel %vm378, 1, 0
    %v395 = vsel %vm379, 1, 0
    %v396 = vsel %vm380, 1, 0
    %v397 = vsel %vm381, 1, 0
    %v398 = vsel %vm382, 1, 0
    %v399 = vsel %vm383, 1, 0
    %v400 = vsel %vm384, 1, 0
    %v401 = vsel %vm385, 1, 0
    %v402 = vsel %vm386, 1, 0
    %v403 = vsel %vm387, 1, 0
    %v404 = vsel %vm388, 1, 0
    %v405 = vsel %vm389, 1, 0
    %v406 = vsel %vm390, 1, 0
    %v407 = vsel %vm391, 1, 0
    %v408 = vcvt.s32.f32 %v392
    %v409 = vcvt.s32.f32 %v393
    %v410 = vcvt.s32.f32 %v394
    %v411 = vcvt.s32.f32 %v395
    %v412 = vcvt.s32.f32 %v396
    %v413 = vcvt.s32.f32 %v397
    %v414 = vcvt.s32.f32 %v398
    %v415 = vcvt.s32.f32 %v399
    %v416 = vcvt.s32.f32 %v400
    %v417 = vcvt.s32.f32 %v401
    %v418 = vcvt.s32.f32 %v402
    %v419 = vcvt.s32.f32 %v403
    %v420 = vcvt.s32.f32 %v404
    %v421 = vcvt.s32.f32 %v405
    %v422 = vcvt.s32.f32 %v406
    %v423 = vcvt.s32.f32 %v407
    %v424 = vadd.f32 %v294, %v408
    %v425 = vadd.f32 %v295, %v409
    %v426 = vadd.f32 %v296, %v410
    %v427 = vadd.f32 %v297, %v411
    %v428 = vadd.f32 %v298, %v412
    %v429 = vadd.f32 %v299, %v413
    %v430 = vadd.f32 %v300, %v414
    %v431 = vadd.f32 %v301, %v415
    %v432 = vadd.f32 %v302, %v416
    %v433 = vadd.f32 %v303, %v417
    %v434 = vadd.f32 %v304, %v418
    %v435 = vadd.f32 %v305, %v419
    %v436 = vadd.f32 %v306, %v420
    %v437 = vadd.f32 %v307, %v421
    %v438 = vadd.f32 %v308, %v422
    %v439 = vadd.f32 %v309, %v423
    %s440 = sld [smem:[#allocation3 + $0x3]]
    %v441 = vstv %s440
    %v442 = vadd.s32 %v31, %v441
    %v443 = vadd.s32 %v32, %v441
    %v444 = vadd.s32 %v33, %v441
    %v445 = vadd.s32 %v34, %v441
    %v446 = vadd.s32 %v35, %v441
    %v447 = vadd.s32 %v36, %v441
    %v448 = vadd.s32 %v37, %v441
    %v449 = vadd.s32 %v38, %v441
    %v450 = vadd.s32 %v39, %v441
    %v451 = vadd.s32 %v40, %v441
    %v452 = vadd.s32 %v41, %v441
    %v453 = vadd.s32 %v42, %v441
    %v454 = vadd.s32 %v43, %v441
    %v455 = vadd.s32 %v44, %v441
    %v456 = vadd.s32 %v45, %v441
    %v457 = vadd.s32 %v46, %v441
    %458 = vset.pattern.permute.xlu0 3
    %459 = vperm.xlu0 %458, %v442
    %v460 = vpop.permute.xlu0 %459
    %461 = vset.pattern.permute.xlu0 3
    %462 = vperm.xlu0 %461, %v443
    %v463 = vpop.permute.xlu0 %462
    %464 = vset.pattern.permute.xlu0 3
    %465 = vperm.xlu0 %464, %v444
    %v466 = vpop.permute.xlu0 %465
    %467 = vset.pattern.permute.xlu0 3
    %468 = vperm.xlu0 %467, %v445
    %v469 = vpop.permute.xlu0 %468
    %470 = vset.pattern.permute.xlu0 3
    %471 = vperm.xlu0 %470, %v446
    %v472 = vpop.permute.xlu0 %471
    %473 = vset.pattern.permute.xlu0 3
    %474 = vperm.xlu0 %473, %v447
    %v475 = vpop.permute.xlu0 %474
    %476 = vset.pattern.permute.xlu0 3
    %477 = vperm.xlu0 %476, %v448
    %v478 = vpop.permute.xlu0 %477
    %479 = vset.pattern.permute.xlu0 3
    %480 = vperm.xlu0 %479, %v449
    %v481 = vpop.permute.xlu0 %480
    %482 = vset.pattern.permute.xlu0 3
    %483 = vperm.xlu0 %482, %v450
    %v484 = vpop.permute.xlu0 %483
    %485 = vset.pattern.permute.xlu0 3
    %486 = vperm.xlu0 %485, %v451
    %v487 = vpop.permute.xlu0 %486
    %488 = vset.pattern.permute.xlu0 3
    %489 = vperm.xlu0 %488, %v452
    %v490 = vpop.permute.xlu0 %489
    %491 = vset.pattern.permute.xlu0 3
    %492 = vperm.xlu0 %491, %v453
    %v493 = vpop.permute.xlu0 %492
    %494 = vset.pattern.permute.xlu0 3
    %495 = vperm.xlu0 %494, %v454
    %v496 = vpop.permute.xlu0 %495
    %497 = vset.pattern.permute.xlu0 3
    %498 = vperm.xlu0 %497, %v455
    %v499 = vpop.permute.xlu0 %498
    %500 = vset.pattern.permute.xlu0 3
    %501 = vperm.xlu0 %500, %v456
    %v502 = vpop.permute.xlu0 %501
    %503 = vset.pattern.permute.xlu0 3
    %504 = vperm.xlu0 %503, %v457
    %v505 = vpop.permute.xlu0 %504
    %vm506 = vcmp.eq.s32.totalorder %v460, %v49
    %vm507 = vcmp.eq.s32.totalorder %v463, %v49
    %vm508 = vcmp.eq.s32.totalorder %v466, %v49
    %vm509 = vcmp.eq.s32.totalorder %v469, %v49
    %vm510 = vcmp.eq.s32.totalorder %v472, %v49
    %vm511 = vcmp.eq.s32.totalorder %v475, %v49
    %vm512 = vcmp.eq.s32.totalorder %v478, %v49
    %vm513 = vcmp.eq.s32.totalorder %v481, %v49
    %vm514 = vcmp.eq.s32.totalorder %v484, %v49
    %vm515 = vcmp.eq.s32.totalorder %v487, %v49
    %vm516 = vcmp.eq.s32.totalorder %v490, %v49
    %vm517 = vcmp.eq.s32.totalorder %v493, %v49
    %vm518 = vcmp.eq.s32.totalorder %v496, %v49
    %vm519 = vcmp.eq.s32.totalorder %v499, %v49
    %vm520 = vcmp.eq.s32.totalorder %v502, %v49
    %vm521 = vcmp.eq.s32.totalorder %v505, %v49
    %v522 = vsel %vm506, 1, 0
    %v523 = vsel %vm507, 1, 0
    %v524 = vsel %vm508, 1, 0
    %v525 = vsel %vm509, 1, 0
    %v526 = vsel %vm510, 1, 0
    %v527 = vsel %vm511, 1, 0
    %v528 = vsel %vm512, 1, 0
    %v529 = vsel %vm513, 1, 0
    %v530 = vsel %vm514, 1, 0
    %v531 = vsel %vm515, 1, 0
    %v532 = vsel %vm516, 1, 0
    %v533 = vsel %vm517, 1, 0
    %v534 = vsel %vm518, 1, 0
    %v535 = vsel %vm519, 1, 0
    %v536 = vsel %vm520, 1, 0
    %v537 = vsel %vm521, 1, 0
    %v538 = vcvt.s32.f32 %v522
    %v539 = vcvt.s32.f32 %v523
    %v540 = vcvt.s32.f32 %v524
    %v541 = vcvt.s32.f32 %v525
    %v542 = vcvt.s32.f32 %v526
    %v543 = vcvt.s32.f32 %v527
    %v544 = vcvt.s32.f32 %v528
    %v545 = vcvt.s32.f32 %v529
    %v546 = vcvt.s32.f32 %v530
    %v547 = vcvt.s32.f32 %v531
    %v548 = vcvt.s32.f32 %v532
    %v549 = vcvt.s32.f32 %v533
    %v550 = vcvt.s32.f32 %v534
    %v551 = vcvt.s32.f32 %v535
    %v552 = vcvt.s32.f32 %v536
    %v553 = vcvt.s32.f32 %v537
    %v554 = vadd.f32 %v424, %v538
    %v555 = vadd.f32 %v425, %v539
    %v556 = vadd.f32 %v426, %v540
    %v557 = vadd.f32 %v427, %v541
    %v558 = vadd.f32 %v428, %v542
    %v559 = vadd.f32 %v429, %v543
    %v560 = vadd.f32 %v430, %v544
    %v561 = vadd.f32 %v431, %v545
    %v562 = vadd.f32 %v432, %v546
    %v563 = vadd.f32 %v433, %v547
    %v564 = vadd.f32 %v434, %v548
    %v565 = vadd.f32 %v435, %v549
    %v566 = vadd.f32 %v436, %v550
    %v567 = vadd.f32 %v437, %v551
    %v568 = vadd.f32 %v438, %v552
    %v569 = vadd.f32 %v439, %v553
    %v571 = vlaneseq
    %v572 = vshrl.u32 %v571, 7
    %v573 = vsub.s32 0, %v572
    %v574 = vrot.slane %v47, %v573
    %v576 = vmul.f32 %v554, %v574
    %v577 = vmul.f32 %v555, %v574
    %v578 = vmul.f32 %v556, %v574
    %v579 = vmul.f32 %v557, %v574
    %v580 = vmul.f32 %v558, %v574
    %v581 = vmul.f32 %v559, %v574
    %v582 = vmul.f32 %v560, %v574
    %v583 = vmul.f32 %v561, %v574
    %v584 = vmul.f32 %v562, %v574
    %v585 = vmul.f32 %v563, %v574
    %v586 = vmul.f32 %v564, %v574
    %v587 = vmul.f32 %v565, %v574
    %v588 = vmul.f32 %v566, %v574
    %v589 = vmul.f32 %v567, %v574
    %v590 = vmul.f32 %v568, %v574
    %v591 = vmul.f32 %v569, %v574
    %592 = vadd.xlane.f32.xlu0 %v576
    %v593 = vpop.xlane.xlu0 %592
    %594 = vadd.xlane.f32.xlu0 %v577
    %v595 = vpop.xlane.xlu0 %594
    %596 = vadd.xlane.f32.xlu0 %v578
    %v597 = vpop.xlane.xlu0 %596
    %598 = vadd.xlane.f32.xlu0 %v579
    %v599 = vpop.xlane.xlu0 %598
    %600 = vadd.xlane.f32.xlu0 %v580
    %v601 = vpop.xlane.xlu0 %600
    %602 = vadd.xlane.f32.xlu0 %v581
    %v603 = vpop.xlane.xlu0 %602
    %604 = vadd.xlane.f32.xlu0 %v582
    %v605 = vpop.xlane.xlu0 %604
    %606 = vadd.xlane.f32.xlu0 %v583
    %v607 = vpop.xlane.xlu0 %606
    %608 = vadd.xlane.f32.xlu0 %v584
    %v609 = vpop.xlane.xlu0 %608
    %610 = vadd.xlane.f32.xlu0 %v585
    %v611 = vpop.xlane.xlu0 %610
    %612 = vadd.xlane.f32.xlu0 %v586
    %v613 = vpop.xlane.xlu0 %612
    %614 = vadd.xlane.f32.xlu0 %v587
    %v615 = vpop.xlane.xlu0 %614
    %616 = vadd.xlane.f32.xlu0 %v588
    %v617 = vpop.xlane.xlu0 %616
    %618 = vadd.xlane.f32.xlu0 %v589
    %v619 = vpop.xlane.xlu0 %618
    %620 = vadd.xlane.f32.xlu0 %v590
    %v621 = vpop.xlane.xlu0 %620
    %622 = vadd.xlane.f32.xlu0 %v591
    %v623 = vpop.xlane.xlu0 %622
    %s624 = sld [smem:[#allocation2]]
    %v625 = vstv %s624
    %v626 = vadd.f32 %v593, %v625
    %v627 = vadd.f32 %v595, %v625
    %v628 = vadd.f32 %v597, %v625
    %v629 = vadd.f32 %v599, %v625
    %v630 = vadd.f32 %v601, %v625
    %v631 = vadd.f32 %v603, %v625
    %v632 = vadd.f32 %v605, %v625
    %v633 = vadd.f32 %v607, %v625
    %v634 = vadd.f32 %v609, %v625
    %v635 = vadd.f32 %v611, %v625
    %v636 = vadd.f32 %v613, %v625
    %v637 = vadd.f32 %v615, %v625
    %v638 = vadd.f32 %v617, %v625
    %v639 = vadd.f32 %v619, %v625
    %v640 = vadd.f32 %v621, %v625
    %v641 = vadd.f32 %v623, %v625
    %vm642 = vcmask 7168
    %643 = vst.msk [vmem:[%s4] sm:$0xff] %vm642, %v626
    %644 = vst.msk [vmem:[%s4 + $0x8] sm:$0xff] %vm642, %v627
    %645 = vst.msk [vmem:[%s4 + $0x10] sm:$0xff] %vm642, %v628
    %646 = vst.msk [vmem:[%s4 + $0x18] sm:$0xff] %vm642, %v629
    %647 = vst.msk [vmem:[%s4 + $0x20] sm:$0xff] %vm642, %v630
    %648 = vst.msk [vmem:[%s4 + $0x28] sm:$0xff] %vm642, %v631
    %649 = vst.msk [vmem:[%s4 + $0x30] sm:$0xff] %vm642, %v632
    %650 = vst.msk [vmem:[%s4 + $0x38] sm:$0xff] %vm642, %v633
    %651 = vst.msk [vmem:[%s4 + $0x40] sm:$0xff] %vm642, %v634
    %652 = vst.msk [vmem:[%s4 + $0x48] sm:$0xff] %vm642, %v635
    %653 = vst.msk [vmem:[%s4 + $0x50] sm:$0xff] %vm642, %v636
    %654 = vst.msk [vmem:[%s4 + $0x58] sm:$0xff] %vm642, %v637
    %655 = vst.msk [vmem:[%s4 + $0x60] sm:$0xff] %vm642, %v638
    %656 = vst.msk [vmem:[%s4 + $0x68] sm:$0xff] %vm642, %v639
    %657 = vst.msk [vmem:[%s4 + $0x70] sm:$0xff] %vm642, %v640
    %658 = vst.msk [vmem:[%s4 + $0x78] sm:$0xff] %vm642, %v641
    // Predicated region
    $region22: #{tpu_custom_call.1} parent=1 // pred_check
      _
    $region23: #{tpu_custom_call.1} parent=1 // pred_check_branch
      %660 = sbr.rel (0) target = $region25
    $region24: #{tpu_custom_call.1} parent=1 // pred_region
      _
    $region25: #{tpu_custom_call.1} parent=1 // pred_fallthru
      _
    // Predicated region
    $region26: #{tpu_custom_call.1} parent=1 // pred_check
      _
    $region27: #{tpu_custom_call.1} parent=1 // pred_check_branch
      %662 = sbr.rel (0) target = $region29
    $region28: #{tpu_custom_call.1} parent=1 // pred_region
      _
    $region29: #{tpu_custom_call.1} parent=1 // pred_fallthru
      _
    %663 = vsyncpa [#allocation4], 1

</llo_original>
